<compile_context>
chip_gen: v7x
topology: tpu7x:2x2x1
jax: 0.10.0
libtpu: 0.0.40
codegen_flags: <defaults>
</compile_context>

<pallas_src>
import functools

import jax
import jax.numpy as jnp
from jax.experimental import pallas as pl
from jax.experimental.pallas import tpu as pltpu


def _round_up(v: int, m: int) -> int:
    return (v + m - 1) // m * m


def nas_head_kernel(x_ref, w_ref, b_ref, o_ref, acc_ref, *, inv_hw):
    """Fused AdaptiveAvgPool2d((1,1)) -> flatten -> Linear.

    Grid = (batch tiles, spatial-reduction tiles); reduction axis last.

    x_ref   : (Bt, HWt, C)    feature-map tile, C on lanes
    w_ref   : (C, Np)         fc weight (transposed + lane-padded)
    b_ref   : (1, Np)         fc bias   (lane-padded)
    o_ref   : (Bt, Np)        logits tile (resident across the reduction axis)
    acc_ref : (Bt, C) f32     running spatial sum (VMEM scratch)
    """
    k = pl.program_id(1)

    @pl.when(k == 0)
    def _():
        acc_ref[...] = jnp.zeros_like(acc_ref)

    # Spatial pooling: accumulate the sum over this H*W tile (f32 accumulator,
    # works for f32 or bf16 feature maps).
    acc_ref[...] += jnp.sum(x_ref[...].astype(jnp.float32), axis=1)

    @pl.when(k == pl.num_programs(1) - 1)
    def _():
        pooled = acc_ref[...] * inv_hw                  # mean = sum * 1/(H*W), once
        logits = jnp.dot(pooled, w_ref[...],
                         preferred_element_type=jnp.float32)   # (Bt, Np) on MXU
        o_ref[...] = (logits + b_ref[...]).astype(o_ref.dtype)


def nas_backbone_forward(x_nchw, fc_w, fc_b, *, b_tile=8, hw_tile=128):
    """NASBackbone.forward with the backbone treated as identity.

    x_nchw : (B, C, H, W)  backbone output feature map (NCHW, torch layout)
    fc_w   : (N, C)        nn.Linear weight (torch layout: out_features, in_features)
    fc_b   : (N,)          nn.Linear bias
    returns: (B, N) logits, float32
    """
    # TODO(synk): the actual backbone is resolved dynamically via
    # PrototypeHelper.external_model_builder[backbone_type] and is not defined
    # in this module; it is treated as identity (x == final feature map).
    feat = x_nchw
    B, C, H, W = feat.shape
    HW = H * W
    N = fc_w.shape[0]

    # C-on-lanes layout for dense vregs and a 128-aligned MXU contraction.
    # TODO(synk): in a fused pipeline the backbone would emit NHWC directly,
    # making this transpose (and the HBM round trip of the feature map) free.
    x_bhwc = jnp.transpose(feat, (0, 2, 3, 1)).reshape(B, HW, C)

    # ---- tile sizes -------------------------------------------------------
    # Batch tile (output sublane dim): multiple of 8, or the full batch.
    if B >= b_tile:
        bt = b_tile
        B_pad = _round_up(B, bt)
    else:
        bt = B
        B_pad = B
    # Spatial reduction tile: multiple of 8 sublanes. Sweep per generation for
    # real shapes; 128 keeps (bt, hwt, C) tiles well inside v7x's VMEM.
    hwt = _round_up(min(hw_tile, _round_up(HW, 8)), 8)
    HW_pad = _round_up(HW, hwt)
    # Class (lane) padding: lane-dense output store, non-degenerate MXU N dim.
    Np = max(_round_up(N, 128), 128)

    # ---- wrapper-side padding (zeros don't change the pooled sum) ---------
    if HW_pad != HW:
        x_bhwc = jnp.pad(x_bhwc, ((0, 0), (0, HW_pad - HW), (0, 0)))
    if B_pad != B:
        x_bhwc = jnp.pad(x_bhwc, ((0, B_pad - B), (0, 0), (0, 0)))
    w_pad = jnp.pad(jnp.transpose(fc_w), ((0, 0), (0, Np - N)))      # (C, Np)
    b_pad = jnp.pad(fc_b, (0, Np - N)).reshape(1, Np)                # (1, Np)

    grid = (B_pad // bt, HW_pad // hwt)

    # ---- VMEM budget (double-buffered x tile + resident weight/bias/out) --
    x_tile_bytes = bt * hwt * C * x_bhwc.dtype.itemsize
    fixed_bytes = (C * Np + Np + bt * Np + bt * C) * 4
    vmem_limit = int(min(max(4 * x_tile_bytes + 2 * fixed_bytes,
                             16 * 1024 * 1024),
                         48 * 1024 * 1024))

    kernel = functools.partial(nas_head_kernel, inv_hw=1.0 / float(HW))

    out_pad = pl.pallas_call(
        kernel,
        out_shape=jax.ShapeDtypeStruct((B_pad, Np), jnp.float32),
        grid=grid,
        in_specs=[
            pl.BlockSpec((bt, hwt, C), lambda b, k: (b, k, 0)),   # feature tiles
            pl.BlockSpec((C, Np), lambda b, k: (0, 0)),           # fc weight
            pl.BlockSpec((1, Np), lambda b, k: (0, 0)),           # fc bias
        ],
        out_specs=pl.BlockSpec((bt, Np), lambda b, k: (b, 0)),    # logits (acc-resident)
        scratch_shapes=[pltpu.VMEM((bt, C), jnp.float32)],        # pooled-sum accumulator
        compiler_params=pltpu.CompilerParams(
            dimension_semantics=("parallel", "arbitrary"),
            vmem_limit_bytes=vmem_limit,
        ),
    )(x_bhwc, w_pad, b_pad)

    return out_pad[:B, :N]


if __name__ == "__main__":
    key = jax.random.PRNGKey(0)
    B, C, H, W = 2, 4, 16, 16
    num_classes = 10

    kx, kw, kb = jax.random.split(key, 3)
    x = jax.random.normal(kx, (B, C, H, W), dtype=jnp.float32)

    # Deterministic fc params (torch nn.Linear layout: weight (out, in), bias (out,))
    bound = 1.0 / (C ** 0.5)
    fc_w = jax.random.uniform(kw, (num_classes, C), jnp.float32, -bound, bound)
    fc_b = jax.random.uniform(kb, (num_classes,), jnp.float32, -bound, bound)

    out = nas_backbone_forward(x, fc_w, fc_b)
    out = jax.block_until_ready(out)
    assert out.shape == (B, num_classes), out.shape

    # Pure-JAX reference: avgpool(1,1) -> flatten -> fc
    ref = x.mean(axis=(2, 3)) @ fc_w.T + fc_b
    assert jnp.allclose(out, ref, atol=1e-5, rtol=1e-5), "mismatch vs reference"

    print("KERNEL_OK")
</pallas_src>

<mosaic_0001>
module attributes {stable_mosaic.version = 11 : i64} {
  func.func @nas_head_kernel(%arg0: i32, %arg1: i32, %arg2: memref<2x128x4xf32, #tpu.memory_space<vmem>>, %arg3: memref<4x128xf32, #tpu.memory_space<vmem>>, %arg4: memref<1x128xf32, #tpu.memory_space<vmem>>, %arg5: memref<2x128xf32, #tpu.memory_space<vmem>>, %arg6: memref<2x4xf32, #tpu.memory_space<vmem>>) attributes {dimension_semantics = [#tpu.dimension_semantics<parallel>, #tpu.dimension_semantics<arbitrary>], iteration_bounds = array<i64: 1, 2>, scalar_prefetch = 0 : i64, scratch_operands = 1 : i64, tpu.core_type = #tpu.core_type<tc>, window_params = [{transform_indices = @transform_0, window_bounds = array<i64: 2, 128, 4>}, {pipeline_mode = #tpu.pipeline_mode<synchronous>, transform_indices = @transform_1, window_bounds = array<i64: 4, 128>}, {pipeline_mode = #tpu.pipeline_mode<synchronous>, transform_indices = @transform_2, window_bounds = array<i64: 1, 128>}, {transform_indices = @transform_3, window_bounds = array<i64: 2, 128>}]} {
    %c0_i32 = arith.constant 0 : i32
    %0 = arith.cmpi eq, %arg1, %c0_i32 : i32
    %1 = arith.extui %0 : i1 to i32
    %c0_i32_0 = arith.constant 0 : i32
    %2 = arith.cmpi ne, %1, %c0_i32_0 : i32
    scf.if %2 {
      %cst_8 = arith.constant 0.000000e+00 : f32
      %11 = vector.broadcast %cst_8 : f32 to vector<2x4xf32>
      %c0_9 = arith.constant 0 : index
      %c0_10 = arith.constant 0 : index
      %12 = vector.load %arg6[%c0_9, %c0_10] : memref<2x4xf32, #tpu.memory_space<vmem>>, vector<2x4xf32>
      tpu.vector_store %arg6[%c0_9, %c0_10], %11 {strides = array<i32>} : memref<2x4xf32, #tpu.memory_space<vmem>>, vector<2x4xf32>,
    } else {
    }
    %c0 = arith.constant 0 : index
    %c0_1 = arith.constant 0 : index
    %3 = vector.load %arg6[%c0, %c0_1] : memref<2x4xf32, #tpu.memory_space<vmem>>, vector<2x4xf32>
    %c0_2 = arith.constant 0 : index
    %c0_3 = arith.constant 0 : index
    %c0_4 = arith.constant 0 : index
    %4 = vector.load %arg2[%c0_2, %c0_3, %c0_4] : memref<2x128x4xf32, #tpu.memory_space<vmem>>, vector<2x128x4xf32>
    %cst = arith.constant dense<0.000000e+00> : vector<2x4xf32>
    %5 = vector.multi_reduction <add>, %4, %cst [1] : vector<2x128x4xf32> to vector<2x4xf32>
    %6 = arith.addf %3, %5 : vector<2x4xf32>
    %c0_5 = arith.constant 0 : index
    %c0_6 = arith.constant 0 : index
    %7 = vector.load %arg6[%c0_5, %c0_6] : memref<2x4xf32, #tpu.memory_space<vmem>>, vector<2x4xf32>
    tpu.vector_store %arg6[%c0_5, %c0_6], %6 {strides = array<i32>} : memref<2x4xf32, #tpu.memory_space<vmem>>, vector<2x4xf32>,
    %c1_i32 = arith.constant 1 : i32
    %8 = arith.cmpi eq, %arg1, %c1_i32 : i32
    %9 = arith.extui %8 : i1 to i32
    %c0_i32_7 = arith.constant 0 : i32
    %10 = arith.cmpi ne, %9, %c0_i32_7 : i32
    scf.if %10 {
      %c0_8 = arith.constant 0 : index
      %c0_9 = arith.constant 0 : index
      %11 = vector.load %arg6[%c0_8, %c0_9] : memref<2x4xf32, #tpu.memory_space<vmem>>, vector<2x4xf32>
      %cst_10 = arith.constant 3.906250e-03 : f32
      %12 = vector.broadcast %cst_10 : f32 to vector<2x4xf32>
      %13 = arith.mulf %11, %12 : vector<2x4xf32>
      %c0_11 = arith.constant 0 : index
      %c0_12 = arith.constant 0 : index
      %14 = vector.load %arg3[%c0_11, %c0_12] : memref<4x128xf32, #tpu.memory_space<vmem>>, vector<4x128xf32>
      %cst_13 = arith.constant dense<0.000000e+00> : vector<2x128xf32>
      %15 = tpu.matmul %13, %14, %cst_13 {dimension_numbers = #tpu.dot_dimension_numbers<[1], [0], [0], [1], [0, 0, 1, 1], [], []>} : vector<2x4xf32>, vector<4x128xf32>, vector<2x128xf32> -> vector<2x128xf32>
      %c0_14 = arith.constant 0 : index
      %c0_15 = arith.constant 0 : index
      %16 = vector.load %arg4[%c0_14, %c0_15] : memref<1x128xf32, #tpu.memory_space<vmem>>, vector<1x128xf32>
      %17 = vector.broadcast %16 : vector<1x128xf32> to vector<2x128xf32>
      %18 = arith.addf %15, %17 : vector<2x128xf32>
      %c0_16 = arith.constant 0 : index
      %c0_17 = arith.constant 0 : index
      %19 = vector.load %arg5[%c0_16, %c0_17] : memref<2x128xf32, #tpu.memory_space<vmem>>, vector<2x128xf32>
      tpu.vector_store %arg5[%c0_16, %c0_17], %18 {strides = array<i32>} : memref<2x128xf32, #tpu.memory_space<vmem>>, vector<2x128xf32>,
    } else {
    }
    return
  }
  func.func @transform_0(%arg0: i32, %arg1: i32) -> (i32, i32, i32) {
    %c0_i32 = arith.constant 0 : i32
    %c0_i32_0 = arith.constant 0 : i32
    return %arg0, %arg1, %c0_i32 : i32, i32, i32
  }
  func.func @transform_1(%arg0: i32, %arg1: i32) -> (i32, i32) {
    %c0_i32 = arith.constant 0 : i32
    %c0_i32_0 = arith.constant 0 : i32
    %c0_i32_1 = arith.constant 0 : i32
    return %c0_i32, %c0_i32_0 : i32, i32
  }
  func.func @transform_2(%arg0: i32, %arg1: i32) -> (i32, i32) {
    %c0_i32 = arith.constant 0 : i32
    %c0_i32_0 = arith.constant 0 : i32
    %c0_i32_1 = arith.constant 0 : i32
    return %c0_i32, %c0_i32_0 : i32, i32
  }
  func.func @transform_3(%arg0: i32, %arg1: i32) -> (i32, i32) {
    %c0_i32 = arith.constant 0 : i32
    %c0_i32_0 = arith.constant 0 : i32
    return %arg0, %c0_i32 : i32, i32
  }
}

</mosaic_0001>

<llo_original>
// kernel: tpu_custom_call.1
$region0: #{tpu_custom_call.1}
  #allocation0 [shape = 'u32[]', space=smem, size = 0x4, offset = 0x4, fixed_abs, tag = 'smem constant byte address 0x4 - core index']
  #allocation1 [shape = 'u32[144,128]{1,0:T(1,128)}', space=vmem, size = 0x12000, scoped, tag = 'internal scratch']
  #allocation2 [shape = 'f32[2,4]{1,0:T(2,128)}', space=vmem, size = 0x400, scoped, tag = 'scratch operand']
  %s0 = inlined_call_operand.vmem [shape: f32[2,256,4], index: 0, kind: input, shape index: {}]
  %s1 = inlined_call_operand.vmem [shape: f32[4,128], index: 1, kind: input, shape index: {}]
  %s2 = inlined_call_operand.vmem [shape: f32[1,128], index: 2, kind: input, shape index: {}]
  %s3 = inlined_call_operand.hbm [shape: f32[2,128], index: 3, kind: output, shape index: {}]
  %s4 = sld [smem:[#allocation0]]
  $region91: #{tpu_custom_call.1} parent=0
    _
  %s6 = ssub.s32 1, %s4
  %s7 = scalar_select 0, %s6, %s4
  $region1: #{tpu_custom_call.1} parent=0
    #allocation3 [shape = 'u8[262144]{0}', space=vmem, size = 0x40000, scoped, tag = 'input window, operand 0']
    #allocation4 [shape = 'u8[1024]{0}', space=vmem, size = 0x400, scoped, tag = 'output window, operand 0, single buffered']
    #allocation5 [shape = 's32[2]{0}', space=sflag, size = 0x8, scoped, tag = 'scoped memory for tpu_custom_call.1']
    %8 = vsyncpa [#allocation5], 0
    loop: start=0, step=1, limit=4
    $region2: #{tpu_custom_call.1} parent=1 // loop_pre_header
      _
    $region3: #{tpu_custom_call.1} parent=1 // loop_header
      %s10 = sphi 0, %s14
      %p11 = scmp.ge.s32.totalorder %s10, 4
      %s17 = sphi 0, %s29
      %s18 = sphi 0, %s25
      %s19 = sphi 0, %s17
      %s20 = sphi 0, %s18
      %s21 = sphi 0, %s19
      %s22 = sphi 0, %s20
      %s34 = sphi 0, %s36
      %s37 = sphi 0, %s34
      %s38 = sphi 0, %s37
      %s54 = sphi 0, %s38
      %s58 = sphi 0, %s58
      %s60 = sphi 0, %s58
      %s61 = sphi 0, %s60
      %s75 = sphi 0, %s61
      %s79 = sphi 0, %s79
      %s81 = sphi 0, %s79
      %s82 = sphi 0, %s81
      %s96 = sphi 0, %s82
      %s102 = sphi 0, %s104
      %s105 = sphi 0, %s102
      %s106 = sphi 0, %s105
      %s122 = sphi 0, %s106
    $region4: #{tpu_custom_call.1} parent=1 // loop_header_branch
      %13 = sbr.rel (%p11) target = $region8
    $region5: #{tpu_custom_call.1} parent=1 // loop_body
      %s15 = ssub.s32 %s10, 1
      %s16 = ssub.s32 %s10, 2
      %s23 = sadd.s32 1, %s18
      %p24 = scmp.ge.s32.totalorder %s23, 2
      %s25 = scalar_select %p24, 0, %s23
      %s26 = sadd.s32 1, %s17
      %s27 = scalar_select %p24, %s26, %s17
      %p28 = scmp.ge.s32.totalorder %s27, 1
      %s29 = scalar_select %p28, 0, %s27
      %s30 = ssub.s32 %s17, %s29
      %s31 = ssub.s32 %s18, %s25
      %s32 = sor.u32 %s30, %s31
      %p33 = scmp.eq.s32.totalorder %s32, 0
      %s35 = sadd.s32 %s34, 1
      %s36 = scalar_select %p33, %s34, %s35
      %p39 = pneg %p33
      %p40 = scmp.eq.s32.totalorder %s10, 1
      %p41 = por %p39, %p40
      %p42 = scmp.ne.s32.totalorder %s34, %s37
      %p43 = scmp.eq.s32.totalorder %s10, 0
      %p44 = por %p42, %p43
      %p45 = scmp.ne.s32.totalorder %s34, %s37
      %p46 = scmp.eq.s32.totalorder %s15, 1
      %p47 = por %p45, %p46
      %p48 = scmp.ne.s32.totalorder %s37, %s38
      %p49 = scmp.eq.s32.totalorder %s15, 0
      %p50 = por %p48, %p49
      %p51 = scmp.ne.s32.totalorder %s37, %s38
      %p52 = scmp.eq.s32.totalorder %s16, 1
      %p53 = por %p51, %p52
      %p55 = scmp.ne.s32.totalorder %s38, %s54
      %p56 = scmp.eq.s32.totalorder %s16, 0
      %p57 = por %p55, %p56
      %s59 = sadd.s32 %s58, 1
      %p62 = scmp.eq.s32.totalorder %s10, 1
      %p63 = scmp.ne.s32.totalorder %s58, %s60
      %p64 = scmp.eq.s32.totalorder %s10, 0
      %p65 = por %p63, %p64
      %p66 = scmp.ne.s32.totalorder %s58, %s60
      %p67 = scmp.eq.s32.totalorder %s15, 1
      %p68 = por %p66, %p67
      %p69 = scmp.ne.s32.totalorder %s60, %s61
      %p70 = scmp.eq.s32.totalorder %s15, 0
      %p71 = por %p69, %p70
      %p72 = scmp.ne.s32.totalorder %s60, %s61
      %p73 = scmp.eq.s32.totalorder %s16, 1
      %p74 = por %p72, %p73
      %p76 = scmp.ne.s32.totalorder %s61, %s75
      %p77 = scmp.eq.s32.totalorder %s16, 0
      %p78 = por %p76, %p77
      %s80 = sadd.s32 %s79, 1
      %p83 = scmp.eq.s32.totalorder %s10, 1
      %p84 = scmp.ne.s32.totalorder %s79, %s81
      %p85 = scmp.eq.s32.totalorder %s10, 0
      %p86 = por %p84, %p85
      %p87 = scmp.ne.s32.totalorder %s79, %s81
      %p88 = scmp.eq.s32.totalorder %s15, 1
      %p89 = por %p87, %p88
      %p90 = scmp.ne.s32.totalorder %s81, %s82
      %p91 = scmp.eq.s32.totalorder %s15, 0
      %p92 = por %p90, %p91
      %p93 = scmp.ne.s32.totalorder %s81, %s82
      %p94 = scmp.eq.s32.totalorder %s16, 1
      %p95 = por %p93, %p94
      %p97 = scmp.ne.s32.totalorder %s82, %s96
      %p98 = scmp.eq.s32.totalorder %s16, 0
      %p99 = por %p97, %p98
      %s100 = ssub.s32 %s17, %s29
      %p101 = scmp.eq.s32.totalorder %s100, 0
      %s103 = sadd.s32 %s102, 1
      %s104 = scalar_select %p101, %s102, %s103
      %p107 = pneg %p101
      %p108 = scmp.eq.s32.totalorder %s10, 1
      %p109 = por %p107, %p108
      %p110 = scmp.ne.s32.totalorder %s102, %s105
      %p111 = scmp.eq.s32.totalorder %s10, 0
      %p112 = por %p110, %p111
      %p113 = scmp.ne.s32.totalorder %s102, %s105
      %p114 = scmp.eq.s32.totalorder %s15, 1
      %p115 = por %p113, %p114
      %p116 = scmp.ne.s32.totalorder %s105, %s106
      %p117 = scmp.eq.s32.totalorder %s15, 0
      %p118 = por %p116, %p117
      %p119 = scmp.ne.s32.totalorder %s105, %s106
      %p120 = scmp.eq.s32.totalorder %s16, 1
      %p121 = por %p119, %p120
      %p123 = scmp.ne.s32.totalorder %s106, %s122
      %p124 = scmp.eq.s32.totalorder %s16, 0
      %p125 = por %p123, %p124
      %p126 = scmp.le.s32.totalorder 1, %s10
      %p127 = scmp.lt.s32.totalorder %s10, 3
      %p128 = pnand %p126, %p127
      %p129 = pneg %p128
      // Predicated region
      $region9: #{tpu_custom_call.1} parent=5 // pred_check
        _
      $region10: #{tpu_custom_call.1} parent=5 // pred_check_branch
        %131 = sbr.rel (%p128) target = $region12
      $region11: #{tpu_custom_call.1} parent=5 // pred_region
        %s132 = ssub.s32 %s10, 1
        // Predicated region
        $region13: #{tpu_custom_call.1} parent=11 // pred_check
          %p133 = pneg %p71
        $region14: #{tpu_custom_call.1} parent=11 // pred_check_branch
          %135 = sbr.rel (%p133) target = $region16
        $region15: #{tpu_custom_call.1} parent=11 // pred_region
          _
        $region16: #{tpu_custom_call.1} parent=11 // pred_fallthru
          _
        // Predicated region
        $region17: #{tpu_custom_call.1} parent=11 // pred_check
          %p136 = pneg %p92
        $region18: #{tpu_custom_call.1} parent=11 // pred_check_branch
          %138 = sbr.rel (%p136) target = $region20
        $region19: #{tpu_custom_call.1} parent=11 // pred_region
          _
        $region20: #{tpu_custom_call.1} parent=11 // pred_fallthru
          _
      $region12: #{tpu_custom_call.1} parent=5 // pred_fallthru
        _
      %p139 = scmp.lt.s32.totalorder %s10, 2
      // Predicated region
      $region21: #{tpu_custom_call.1} parent=5 // pred_check
        %p140 = pneg %p139
      $region22: #{tpu_custom_call.1} parent=5 // pred_check_branch
        %142 = sbr.rel (%p140) target = $region24
      $region23: #{tpu_custom_call.1} parent=5 // pred_region
        // Predicated region
        $region25: #{tpu_custom_call.1} parent=23 // pred_check
          %p143 = pneg %p44
        $region26: #{tpu_custom_call.1} parent=23 // pred_check_branch
          %145 = sbr.rel (%p143) target = $region28
        $region27: #{tpu_custom_call.1} parent=23 // pred_region
          %s146 = sand.u32 %s34, 1
          %s147 = sand.u32 %s34, 1
          %s148 = smul.addr %s147, 256
          %s149 = scalar_lea.vmem [#allocation3], %s148
          %s150 = smul.u32 2, %s17
          %s151 = smul.u32 16, %s18
          %s152 = smul.addr %s150, 32
          %s153 = sadd.s32 %s151, %s152
          %s154 = smul.addr %s153, 8
          %s155 = scalar_lea.vmem %s0, %s154
          // Predicated region
          $region29: #{tpu_custom_call.1} parent=27 // pred_check
            _
          $region30: #{tpu_custom_call.1} parent=27 // pred_check_branch
            %157 = sbr.rel (0) target = $region32
          $region31: #{tpu_custom_call.1} parent=27 // pred_region
            // Predicated region
            $region33: #{tpu_custom_call.1} parent=31 // pred_check
              _
            $region34: #{tpu_custom_call.1} parent=31 // pred_check_branch
              %159 = sbr.rel (0) target = $region36
            $region35: #{tpu_custom_call.1} parent=31 // pred_region
              // Predicated region
              $region48: #{tpu_custom_call.1} parent=35 // pred_check
                _
              $region49: #{tpu_custom_call.1} parent=35 // pred_check_branch
                %236 = sbr.rel (0) target = $region51
              $region50: #{tpu_custom_call.1} parent=35 // pred_region
                loop: start=0, step=1, limit=1
                $region52: #{tpu_custom_call.1} parent=50 // loop_pre_header
                  _
                $region53: #{tpu_custom_call.1} parent=50 // loop_header
                  %s238 = sphi 0, %s242
                  %p239 = scmp.ge.s32.totalorder %s238, 1
                  %s243 = sphi %s155, %s155
                  %s244 = sphi %s149, %s149
                $region54: #{tpu_custom_call.1} parent=50 // loop_header_branch
                  %241 = sbr.rel (%p239) target = $region58
                $region55: #{tpu_custom_call.1} parent=50 // loop_body
                  %v245 = vld [vmem:[%s243] sm:$0xff]
                  %246 = vst [vmem:[%s244] sm:$0xff] %v245
                  %v247 = vld [vmem:[%s243 + $0x8] sm:$0xff]
                  %248 = vst [vmem:[%s244 + $0x8] sm:$0xff] %v247
                  %v249 = vld [vmem:[%s243 + $0x10] sm:$0xff]
                  %250 = vst [vmem:[%s244 + $0x10] sm:$0xff] %v249
                  %v251 = vld [vmem:[%s243 + $0x18] sm:$0xff]
                  %252 = vst [vmem:[%s244 + $0x18] sm:$0xff] %v251
                  %v253 = vld [vmem:[%s243 + $0x20] sm:$0xff]
                  %254 = vst [vmem:[%s244 + $0x20] sm:$0xff] %v253
                  %v255 = vld [vmem:[%s243 + $0x28] sm:$0xff]
                  %256 = vst [vmem:[%s244 + $0x28] sm:$0xff] %v255
                  %v257 = vld [vmem:[%s243 + $0x30] sm:$0xff]
                  %258 = vst [vmem:[%s244 + $0x30] sm:$0xff] %v257
                  %v259 = vld [vmem:[%s243 + $0x38] sm:$0xff]
                  %260 = vst [vmem:[%s244 + $0x38] sm:$0xff] %v259
                  %v261 = vld [vmem:[%s243 + $0x40] sm:$0xff]
                  %262 = vst [vmem:[%s244 + $0x40] sm:$0xff] %v261
                  %v263 = vld [vmem:[%s243 + $0x48] sm:$0xff]
                  %264 = vst [vmem:[%s244 + $0x48] sm:$0xff] %v263
                  %v265 = vld [vmem:[%s243 + $0x50] sm:$0xff]
                  %266 = vst [vmem:[%s244 + $0x50] sm:$0xff] %v265
                  %v267 = vld [vmem:[%s243 + $0x58] sm:$0xff]
                  %268 = vst [vmem:[%s244 + $0x58] sm:$0xff] %v267
                  %v269 = vld [vmem:[%s243 + $0x60] sm:$0xff]
                  %270 = vst [vmem:[%s244 + $0x60] sm:$0xff] %v269
                  %v271 = vld [vmem:[%s243 + $0x68] sm:$0xff]
                  %272 = vst [vmem:[%s244 + $0x68] sm:$0xff] %v271
                  %v273 = vld [vmem:[%s243 + $0x70] sm:$0xff]
                  %274 = vst [vmem:[%s244 + $0x70] sm:$0xff] %v273
                  %v275 = vld [vmem:[%s243 + $0x78] sm:$0xff]
                  %276 = vst [vmem:[%s244 + $0x78] sm:$0xff] %v275
                  %v277 = vld [vmem:[%s243 + $0x100] sm:$0xff]
                  %278 = vst [vmem:[%s244 + $0x80] sm:$0xff] %v277
                  %v279 = vld [vmem:[%s243 + $0x108] sm:$0xff]
                  %280 = vst [vmem:[%s244 + $0x88] sm:$0xff] %v279
                  %v281 = vld [vmem:[%s243 + $0x110] sm:$0xff]
                  %282 = vst [vmem:[%s244 + $0x90] sm:$0xff] %v281
                  %v283 = vld [vmem:[%s243 + $0x118] sm:$0xff]
                  %284 = vst [vmem:[%s244 + $0x98] sm:$0xff] %v283
                  %v285 = vld [vmem:[%s243 + $0x120] sm:$0xff]
                  %286 = vst [vmem:[%s244 + $0xa0] sm:$0xff] %v285
                  %v287 = vld [vmem:[%s243 + $0x128] sm:$0xff]
                  %288 = vst [vmem:[%s244 + $0xa8] sm:$0xff] %v287
                  %v289 = vld [vmem:[%s243 + $0x130] sm:$0xff]
                  %290 = vst [vmem:[%s244 + $0xb0] sm:$0xff] %v289
                  %v291 = vld [vmem:[%s243 + $0x138] sm:$0xff]
                  %292 = vst [vmem:[%s244 + $0xb8] sm:$0xff] %v291
                  %v293 = vld [vmem:[%s243 + $0x140] sm:$0xff]
                  %294 = vst [vmem:[%s244 + $0xc0] sm:$0xff] %v293
                  %v295 = vld [vmem:[%s243 + $0x148] sm:$0xff]
                  %296 = vst [vmem:[%s244 + $0xc8] sm:$0xff] %v295
                  %v297 = vld [vmem:[%s243 + $0x150] sm:$0xff]
                  %298 = vst [vmem:[%s244 + $0xd0] sm:$0xff] %v297
                  %v299 = vld [vmem:[%s243 + $0x158] sm:$0xff]
                  %300 = vst [vmem:[%s244 + $0xd8] sm:$0xff] %v299
                  %v301 = vld [vmem:[%s243 + $0x160] sm:$0xff]
                  %302 = vst [vmem:[%s244 + $0xe0] sm:$0xff] %v301
                  %v303 = vld [vmem:[%s243 + $0x168] sm:$0xff]
                  %304 = vst [vmem:[%s244 + $0xe8] sm:$0xff] %v303
                  %v305 = vld [vmem:[%s243 + $0x170] sm:$0xff]
                  %306 = vst [vmem:[%s244 + $0xf0] sm:$0xff] %v305
                  %v307 = vld [vmem:[%s243 + $0x178] sm:$0xff]
                  %308 = vst [vmem:[%s244 + $0xf8] sm:$0xff] %v307
                $region56: #{tpu_custom_call.1} parent=50 // loop_footer
                  %s242 = sadd.s32 1, %s238
                $region57: #{tpu_custom_call.1} parent=50 // loop_footer_branch
                  %237 = sbr.rel target = $region53
                $region58: #{tpu_custom_call.1} parent=50 // loop_exit
                  _
              $region51: #{tpu_custom_call.1} parent=35 // pred_fallthru
                _
              // Predicated region
              $region59: #{tpu_custom_call.1} parent=35 // pred_check
                _
              $region60: #{tpu_custom_call.1} parent=35 // pred_check_branch
                %310 = sbr.rel target = $region62
              $region61: #{tpu_custom_call.1} parent=35 // pred_region
                _
              $region62: #{tpu_custom_call.1} parent=35 // pred_fallthru
                _
            $region36: #{tpu_custom_call.1} parent=31 // pred_fallthru
              _
            // Predicated region
            $region37: #{tpu_custom_call.1} parent=31 // pred_check
              _
            $region38: #{tpu_custom_call.1} parent=31 // pred_check_branch
              %161 = sbr.rel target = $region40
            $region39: #{tpu_custom_call.1} parent=31 // pred_region
              loop: start=0, step=1, limit=1
              $region41: #{tpu_custom_call.1} parent=39 // loop_pre_header
                _
              $region42: #{tpu_custom_call.1} parent=39 // loop_header
                %s164 = sphi 0, %s168
                %p165 = scmp.ge.s32.totalorder %s164, 1
                %s169 = sphi %s155, %s155
                %s170 = sphi %s149, %s149
              $region43: #{tpu_custom_call.1} parent=39 // loop_header_branch
                %167 = sbr.rel (%p165) target = $region47
              $region44: #{tpu_custom_call.1} parent=39 // loop_body
                %v171 = vld [vmem:[%s169] sm:$0xff]
                %172 = vst [vmem:[%s170] sm:$0xff] %v171
                %v173 = vld [vmem:[%s169 + $0x8] sm:$0xff]
                %174 = vst [vmem:[%s170 + $0x8] sm:$0xff] %v173
                %v175 = vld [vmem:[%s169 + $0x10] sm:$0xff]
                %176 = vst [vmem:[%s170 + $0x10] sm:$0xff] %v175
                %v177 = vld [vmem:[%s169 + $0x18] sm:$0xff]
                %178 = vst [vmem:[%s170 + $0x18] sm:$0xff] %v177
                %v179 = vld [vmem:[%s169 + $0x20] sm:$0xff]
                %180 = vst [vmem:[%s170 + $0x20] sm:$0xff] %v179
                %v181 = vld [vmem:[%s169 + $0x28] sm:$0xff]
                %182 = vst [vmem:[%s170 + $0x28] sm:$0xff] %v181
                %v183 = vld [vmem:[%s169 + $0x30] sm:$0xff]
                %184 = vst [vmem:[%s170 + $0x30] sm:$0xff] %v183
                %v185 = vld [vmem:[%s169 + $0x38] sm:$0xff]
                %186 = vst [vmem:[%s170 + $0x38] sm:$0xff] %v185
                %v187 = vld [vmem:[%s169 + $0x40] sm:$0xff]
                %188 = vst [vmem:[%s170 + $0x40] sm:$0xff] %v187
                %v189 = vld [vmem:[%s169 + $0x48] sm:$0xff]
                %190 = vst [vmem:[%s170 + $0x48] sm:$0xff] %v189
                %v191 = vld [vmem:[%s169 + $0x50] sm:$0xff]
                %192 = vst [vmem:[%s170 + $0x50] sm:$0xff] %v191
                %v193 = vld [vmem:[%s169 + $0x58] sm:$0xff]
                %194 = vst [vmem:[%s170 + $0x58] sm:$0xff] %v193
                %v195 = vld [vmem:[%s169 + $0x60] sm:$0xff]
                %196 = vst [vmem:[%s170 + $0x60] sm:$0xff] %v195
                %v197 = vld [vmem:[%s169 + $0x68] sm:$0xff]
                %198 = vst [vmem:[%s170 + $0x68] sm:$0xff] %v197
                %v199 = vld [vmem:[%s169 + $0x70] sm:$0xff]
                %200 = vst [vmem:[%s170 + $0x70] sm:$0xff] %v199
                %v201 = vld [vmem:[%s169 + $0x78] sm:$0xff]
                %202 = vst [vmem:[%s170 + $0x78] sm:$0xff] %v201
                %v203 = vld [vmem:[%s169 + $0x100] sm:$0xff]
                %204 = vst [vmem:[%s170 + $0x80] sm:$0xff] %v203
                %v205 = vld [vmem:[%s169 + $0x108] sm:$0xff]
                %206 = vst [vmem:[%s170 + $0x88] sm:$0xff] %v205
                %v207 = vld [vmem:[%s169 + $0x110] sm:$0xff]
                %208 = vst [vmem:[%s170 + $0x90] sm:$0xff] %v207
                %v209 = vld [vmem:[%s169 + $0x118] sm:$0xff]
                %210 = vst [vmem:[%s170 + $0x98] sm:$0xff] %v209
                %v211 = vld [vmem:[%s169 + $0x120] sm:$0xff]
                %212 = vst [vmem:[%s170 + $0xa0] sm:$0xff] %v211
                %v213 = vld [vmem:[%s169 + $0x128] sm:$0xff]
                %214 = vst [vmem:[%s170 + $0xa8] sm:$0xff] %v213
                %v215 = vld [vmem:[%s169 + $0x130] sm:$0xff]
                %216 = vst [vmem:[%s170 + $0xb0] sm:$0xff] %v215
                %v217 = vld [vmem:[%s169 + $0x138] sm:$0xff]
                %218 = vst [vmem:[%s170 + $0xb8] sm:$0xff] %v217
                %v219 = vld [vmem:[%s169 + $0x140] sm:$0xff]
                %220 = vst [vmem:[%s170 + $0xc0] sm:$0xff] %v219
                %v221 = vld [vmem:[%s169 + $0x148] sm:$0xff]
                %222 = vst [vmem:[%s170 + $0xc8] sm:$0xff] %v221
                %v223 = vld [vmem:[%s169 + $0x150] sm:$0xff]
                %224 = vst [vmem:[%s170 + $0xd0] sm:$0xff] %v223
                %v225 = vld [vmem:[%s169 + $0x158] sm:$0xff]
                %226 = vst [vmem:[%s170 + $0xd8] sm:$0xff] %v225
                %v227 = vld [vmem:[%s169 + $0x160] sm:$0xff]
                %228 = vst [vmem:[%s170 + $0xe0] sm:$0xff] %v227
                %v229 = vld [vmem:[%s169 + $0x168] sm:$0xff]
                %230 = vst [vmem:[%s170 + $0xe8] sm:$0xff] %v229
                %v231 = vld [vmem:[%s169 + $0x170] sm:$0xff]
                %232 = vst [vmem:[%s170 + $0xf0] sm:$0xff] %v231
                %v233 = vld [vmem:[%s169 + $0x178] sm:$0xff]
                %234 = vst [vmem:[%s170 + $0xf8] sm:$0xff] %v233
              $region45: #{tpu_custom_call.1} parent=39 // loop_footer
                %s168 = sadd.s32 1, %s164
              $region46: #{tpu_custom_call.1} parent=39 // loop_footer_branch
                %163 = sbr.rel target = $region42
              $region47: #{tpu_custom_call.1} parent=39 // loop_exit
                _
            $region40: #{tpu_custom_call.1} parent=31 // pred_fallthru
              _
          $region32: #{tpu_custom_call.1} parent=27 // pred_fallthru
            _
          %311 = vnop
        $region28: #{tpu_custom_call.1} parent=23 // pred_fallthru
          _
      $region24: #{tpu_custom_call.1} parent=5 // pred_fallthru
        _
      %p312 = scmp.le.s32.totalorder 1, %s10
      %p313 = scmp.lt.s32.totalorder %s10, 3
      %p314 = pnand %p312, %p313
      %p315 = pneg %p314
      // Predicated region
      $region63: #{tpu_custom_call.1} parent=5 // pred_check
        _
      $region64: #{tpu_custom_call.1} parent=5 // pred_check_branch
        %317 = sbr.rel (%p314) target = $region66
      $region65: #{tpu_custom_call.1} parent=5 // pred_region
        %s318 = ssub.s32 %s10, 1
        %s319 = sand.u32 %s37, 1
        %s320 = sand.u32 %s37, 1
        %s321 = smul.addr %s320, 256
        %s322 = scalar_lea.vmem [#allocation3], %s321
        // Predicated region
        $region67: #{tpu_custom_call.1} parent=65 // pred_check
          %p323 = pneg %p50
        $region68: #{tpu_custom_call.1} parent=65 // pred_check_branch
          %325 = sbr.rel (%p323) target = $region70
        $region69: #{tpu_custom_call.1} parent=65 // pred_region
          _
        $region70: #{tpu_custom_call.1} parent=65 // pred_fallthru
          _
        %s326 = sand.u32 %s37, 1
        %s327 = sand.u32 %s37, 1
        %s328 = smul.addr %s327, 256
        %s329 = scalar_lea.vmem [#allocation3], %s328
        %p330 = pneg %p50
        %p331 = pneg %p47
        %p332 = pneg %p71
        %p333 = pneg %p68
        %p334 = pneg %p92
        %p335 = pneg %p89
        %p336 = pneg %p118
        %p337 = pneg %p115
        %s338 = smul.u32 2, %s19
        %s339 = smul.u32 16, %s20
        %p340 = scmp.eq.s32.totalorder %s20, 0
        // Predicated region
        $region71: #{tpu_custom_call.1} parent=65 // pred_check
          %p341 = pneg %p340
        $region72: #{tpu_custom_call.1} parent=65 // pred_check_branch
          %343 = sbr.rel (%p341) target = $region74
        $region73: #{tpu_custom_call.1} parent=65 // pred_region
          %vm344 = vcmask 25600
          %345 = vst.msk [vmem:[#allocation2] sm:$0x3] %vm344, 0.0
        $region74: #{tpu_custom_call.1} parent=65 // pred_fallthru
          _
        %v346 = vld [vmem:[#allocation2] sm:$0x3]
        %v347 = vld [vmem:[%s322] sm:$0xff]
        %v348 = vld [vmem:[%s322 + $0x8] sm:$0xff]
        %v349 = vld [vmem:[%s322 + $0x10] sm:$0xff]
        %v350 = vld [vmem:[%s322 + $0x18] sm:$0xff]
        %v351 = vld [vmem:[%s322 + $0x20] sm:$0xff]
        %v352 = vld [vmem:[%s322 + $0x28] sm:$0xff]
        %v353 = vld [vmem:[%s322 + $0x30] sm:$0xff]
        %v354 = vld [vmem:[%s322 + $0x38] sm:$0xff]
        %v355 = vld [vmem:[%s322 + $0x40] sm:$0xff]
        %v356 = vld [vmem:[%s322 + $0x48] sm:$0xff]
        %v357 = vld [vmem:[%s322 + $0x50] sm:$0xff]
        %v358 = vld [vmem:[%s322 + $0x58] sm:$0xff]
        %v359 = vld [vmem:[%s322 + $0x60] sm:$0xff]
        %v360 = vld [vmem:[%s322 + $0x68] sm:$0xff]
        %v361 = vld [vmem:[%s322 + $0x70] sm:$0xff]
        %v362 = vld [vmem:[%s322 + $0x78] sm:$0xff]
        %v363 = vld [vmem:[%s322 + $0x80] sm:$0xff]
        %v364 = vld [vmem:[%s322 + $0x88] sm:$0xff]
        %v365 = vld [vmem:[%s322 + $0x90] sm:$0xff]
        %v366 = vld [vmem:[%s322 + $0x98] sm:$0xff]
        %v367 = vld [vmem:[%s322 + $0xa0] sm:$0xff]
        %v368 = vld [vmem:[%s322 + $0xa8] sm:$0xff]
        %v369 = vld [vmem:[%s322 + $0xb0] sm:$0xff]
        %v370 = vld [vmem:[%s322 + $0xb8] sm:$0xff]
        %v371 = vld [vmem:[%s322 + $0xc0] sm:$0xff]
        %v372 = vld [vmem:[%s322 + $0xc8] sm:$0xff]
        %v373 = vld [vmem:[%s322 + $0xd0] sm:$0xff]
        %v374 = vld [vmem:[%s322 + $0xd8] sm:$0xff]
        %v375 = vld [vmem:[%s322 + $0xe0] sm:$0xff]
        %v376 = vld [vmem:[%s322 + $0xe8] sm:$0xff]
        %v377 = vld [vmem:[%s322 + $0xf0] sm:$0xff]
        %v378 = vld [vmem:[%s322 + $0xf8] sm:$0xff]
        %vm379 = vcmask 31744
        %v380 = vsel %vm379, %v347, 0.0
        %v381 = vsel %vm379, %v348, 0.0
        %v382 = vadd.f32 %v380, %v381
        %v383 = vsel %vm379, %v349, 0.0
        %v384 = vadd.f32 %v382, %v383
        %v385 = vsel %vm379, %v350, 0.0
        %v386 = vadd.f32 %v384, %v385
        %v387 = vsel %vm379, %v351, 0.0
        %v388 = vadd.f32 %v386, %v387
        %v389 = vsel %vm379, %v352, 0.0
        %v390 = vadd.f32 %v388, %v389
        %v391 = vsel %vm379, %v353, 0.0
        %v392 = vadd.f32 %v390, %v391
        %v393 = vsel %vm379, %v354, 0.0
        %v394 = vadd.f32 %v392, %v393
        %v395 = vsel %vm379, %v355, 0.0
        %v396 = vadd.f32 %v394, %v395
        %v397 = vsel %vm379, %v356, 0.0
        %v398 = vadd.f32 %v396, %v397
        %v399 = vsel %vm379, %v357, 0.0
        %v400 = vadd.f32 %v398, %v399
        %v401 = vsel %vm379, %v358, 0.0
        %v402 = vadd.f32 %v400, %v401
        %v403 = vsel %vm379, %v359, 0.0
        %v404 = vadd.f32 %v402, %v403
        %v405 = vsel %vm379, %v360, 0.0
        %v406 = vadd.f32 %v404, %v405
        %v407 = vsel %vm379, %v361, 0.0
        %v408 = vadd.f32 %v406, %v407
        %v409 = vsel %vm379, %v362, 0.0
        %v410 = vadd.f32 %v408, %v409
        %v411 = vrot.slane %v410, 4
        %v412 = vadd.f32 %v410, %v411
        %v413 = vrot.slane %v412, 2
        %v414 = vadd.f32 %v412, %v413
        %v415 = vrot.slane %v414, 1
        %v416 = vadd.f32 %v414, %v415
        %v417 = vsel %vm379, %v363, 0.0
        %v418 = vsel %vm379, %v364, 0.0
        %v419 = vadd.f32 %v417, %v418
        %v420 = vsel %vm379, %v365, 0.0
        %v421 = vadd.f32 %v419, %v420
        %v422 = vsel %vm379, %v366, 0.0
        %v423 = vadd.f32 %v421, %v422
        %v424 = vsel %vm379, %v367, 0.0
        %v425 = vadd.f32 %v423, %v424
        %v426 = vsel %vm379, %v368, 0.0
        %v427 = vadd.f32 %v425, %v426
        %v428 = vsel %vm379, %v369, 0.0
        %v429 = vadd.f32 %v427, %v428
        %v430 = vsel %vm379, %v370, 0.0
        %v431 = vadd.f32 %v429, %v430
        %v432 = vsel %vm379, %v371, 0.0
        %v433 = vadd.f32 %v431, %v432
        %v434 = vsel %vm379, %v372, 0.0
        %v435 = vadd.f32 %v433, %v434
        %v436 = vsel %vm379, %v373, 0.0
        %v437 = vadd.f32 %v435, %v436
        %v438 = vsel %vm379, %v374, 0.0
        %v439 = vadd.f32 %v437, %v438
        %v440 = vsel %vm379, %v375, 0.0
        %v441 = vadd.f32 %v439, %v440
        %v442 = vsel %vm379, %v376, 0.0
        %v443 = vadd.f32 %v441, %v442
        %v444 = vsel %vm379, %v377, 0.0
        %v445 = vadd.f32 %v443, %v444
        %v446 = vsel %vm379, %v378, 0.0
        %v447 = vadd.f32 %v445, %v446
        %v448 = vrot.slane %v447, 4
        %v449 = vadd.f32 %v447, %v448
        %v450 = vrot.slane %v449, 2
        %v451 = vadd.f32 %v449, %v450
        %v452 = vrot.slane %v451, 1
        %v453 = vadd.f32 %v451, %v452
        %vm456 = vcmask 1041409
        %v457 = vsel %vm456, %v453, %v416
        %v459 = vadd.f32 %v346, %v457
        %vm460 = vcmask 25600
        %461 = vst.msk [vmem:[#allocation2] sm:$0x3] %vm460, %v459
        %p462 = scmp.eq.s32.totalorder %s20, 1
        // Predicated region
        $region75: #{tpu_custom_call.1} parent=65 // pred_check
          %p463 = pneg %p462
        $region76: #{tpu_custom_call.1} parent=65 // pred_check_branch
          %465 = sbr.rel (%p463) target = $region78
        $region77: #{tpu_custom_call.1} parent=65 // pred_region
          %v466 = vld [vmem:[#allocation2] sm:$0x3]
          %v467 = vmul.f32 %v466, 0.00390625
          %v468 = vld [vmem:[%s1] sm:$0xf]
          %v469 = vld [vmem:[%s2] sm:$0x1]
          %v471 = vlaneseq
          %v472 = vshrl.u32 %v471, 7
          %v473 = vsub.s32 0, %v472
          %v474 = vrot.slane %v469, %v473
          %v477 = vsel %vm379, %v467, 0
          %vm479 = vcmask 1043456
          %v481 = vsel %vm479, %v468, 0
          %483 = vmatprep.subr.mxu0 0.0
          %484 = vmatpush1.msra.mxu0 %v481
          %485 = vmatprep.subr.mxu0 0.0
          %486 = vmatpush1.msra.mxu0 0.0
          %487 = vmatprep.subr.mxu0 0.0
          %488 = vmatpush1.msra.mxu0 0.0
          %489 = vmatprep.subr.mxu0 0.0
          %490 = vmatpush1.msra.mxu0 0.0
          %491 = vmatprep.subr.mxu0 0.0
          %492 = vmatpush1.msra.mxu0 0.0
          %493 = vmatprep.subr.mxu0 0.0
          %494 = vmatpush1.msra.mxu0 0.0
          %495 = vmatprep.subr.mxu0 0.0
          %496 = vmatpush1.msra.mxu0 0.0
          %497 = vmatprep.subr.mxu0 0.0
          %498 = vmatpush1.msra.mxu0 0.0
          %499 = vmatprep.subr.mxu0 0.0
          %500 = vmatpush1.msra.mxu0 0.0
          %501 = vmatprep.subr.mxu0 0.0
          %502 = vmatpush1.msra.mxu0 0.0
          %503 = vmatprep.subr.mxu0 0.0
          %504 = vmatpush1.msra.mxu0 0.0
          %505 = vmatprep.subr.mxu0 0.0
          %506 = vmatpush1.msra.mxu0 0.0
          %507 = vmatprep.subr.mxu0 0.0
          %508 = vmatpush1.msra.mxu0 0.0
          %509 = vmatprep.subr.mxu0 0.0
          %510 = vmatpush1.msra.mxu0 0.0
          %511 = vmatprep.subr.mxu0 0.0
          %512 = vmatpush1.msra.mxu0 0.0
          %513 = vmatprep.subr.mxu0 0.0
          %514 = vmatpush1.msra.mxu0 0.0
          %515 = vmatprep.subr.mxu0 0.0
          %516 = vmatpush1.msra.mxu0 0.0
          %517 = vmatprep.subr.mxu0 0.0
          %518 = vmatpush1.msra.mxu0 0.0
          %519 = vmatprep.subr.mxu0 0.0
          %520 = vmatpush1.msra.mxu0 0.0
          %521 = vmatprep.subr.mxu0 0.0
          %522 = vmatpush1.msra.mxu0 0.0
          %523 = vmatprep.subr.mxu0 0.0
          %524 = vmatpush1.msra.mxu0 0.0
          %525 = vmatprep.subr.mxu0 0.0
          %526 = vmatpush1.msra.mxu0 0.0
          %527 = vmatprep.subr.mxu0 0.0
          %528 = vmatpush1.msra.mxu0 0.0
          %529 = vmatprep.subr.mxu0 0.0
          %530 = vmatpush1.msra.mxu0 0.0
          %531 = vmatprep.subr.mxu0 0.0
          %532 = vmatpush1.msra.mxu0 0.0
          %533 = vmatprep.subr.mxu0 0.0
          %534 = vmatpush1.msra.mxu0 0.0
          %535 = vmatprep.subr.mxu0 0.0
          %536 = vmatpush1.msra.mxu0 0.0
          %537 = vmatprep.subr.mxu0 0.0
          %538 = vmatpush1.msra.mxu0 0.0
          %539 = vmatprep.subr.mxu0 0.0
          %540 = vmatpush1.msra.mxu0 0.0
          %541 = vmatprep.subr.mxu0 0.0
          %542 = vmatpush1.msra.mxu0 0.0
          %543 = vmatprep.subr.mxu0 0.0
          %544 = vmatpush1.msra.mxu0 0.0
          %545 = vmatprep.subr.mxu0 0.0
          %546 = vmatpush1.msra.mxu0 0.0
          %547 = vmatprep.mubr.f32.mxu0 0.0
          %548 = vmatmul.mubr.f32.gmra.mrb[0].mxu0 %v477
          %v549 = vpop.f32.mrb[0].mxu0
          %v550 = vadd.f32 %v474, %v549
          %v551 = vpop.f32.mrb[0].mxu0
          %552 = vdwg.mxu0
          %553 = vst [vmem:[#allocation4] sm:$0x3] %v550
        $region78: #{tpu_custom_call.1} parent=65 // pred_fallthru
          _
        // Predicated region
        $region79: #{tpu_custom_call.1} parent=65 // pred_check
          %p554 = pneg %p115
        $region80: #{tpu_custom_call.1} parent=65 // pred_check_branch
          %556 = sbr.rel (%p554) target = $region82
        $region81: #{tpu_custom_call.1} parent=65 // pred_region
          %s558 = ssub.s32 32, 32
          %559 = vsyncadd [#allocation5], %s558
          %s560 = smul.addr %s19, 32
          %s561 = scalar_lea.hbm %s3, %s560
          %s563 = sshll.u32 [#allocation4], 4
          %s564 = int_to_ptr.vmem [resolvable:$true] %s563
          %566 = dma.vmem_to_hbm [thread:$0]  %s564, 32, %s561, [#allocation5]
        $region82: #{tpu_custom_call.1} parent=65 // pred_fallthru
          _
        // Predicated region
        $region83: #{tpu_custom_call.1} parent=65 // pred_check
          %p567 = pneg %p115
        $region84: #{tpu_custom_call.1} parent=65 // pred_check_branch
          %569 = sbr.rel (%p567) target = $region86
        $region85: #{tpu_custom_call.1} parent=65 // pred_region
          %570 = dma.done [#allocation5], 32
        $region86: #{tpu_custom_call.1} parent=65 // pred_fallthru
          _
      $region66: #{tpu_custom_call.1} parent=5 // pred_fallthru
        _
      %p571 = scmp.le.s32.totalorder 2, %s10
      // Predicated region
      $region87: #{tpu_custom_call.1} parent=5 // pred_check
        %p572 = pneg %p571
      $region88: #{tpu_custom_call.1} parent=5 // pred_check_branch
        %574 = sbr.rel (%p572) target = $region90
      $region89: #{tpu_custom_call.1} parent=5 // pred_region
        %s575 = ssub.s32 %s10, 2
      $region90: #{tpu_custom_call.1} parent=5 // pred_fallthru
        _
    $region6: #{tpu_custom_call.1} parent=1 // loop_footer
      %s14 = sadd.s32 1, %s10
    $region7: #{tpu_custom_call.1} parent=1 // loop_footer_branch
      %9 = sbr.rel target = $region3
    $region8: #{tpu_custom_call.1} parent=1 // loop_exit
      _
    %576 = vsyncpa [#allocation5], 1
    %s577 = scalar_lea.sflag [#allocation5], 1
    %578 = vsyncpa %s577, 1

</llo_original>
